<compile_context>
chip_gen: v7x
topology: tpu7x:2x2x1
jax: 0.10.0
libtpu: 0.0.40
codegen_flags: <defaults>
</compile_context>

<pallas_src>
import functools

import jax
import jax.numpy as jnp
from jax.experimental import pallas as pl
from jax.experimental.pallas import tpu as pltpu

_BN_EPS = 1e-5
_TARGET_BLOCK_BYTES = 1 << 20  # ~1 MiB input tile; 2x-buffered << 16 MiB (v5e default)


def _choose_row_tile(nc, hw, itemsize):
    """Rows per block: a multiple of 8 (sublanes) targeting ~1 MiB, or the full extent."""
    cand = _TARGET_BLOCK_BYTES // max(1, hw * itemsize)
    cand = max(8, (cand // 8) * 8)
    if cand >= nc:
        return nc  # full second-to-last extent is always a legal block dim
    return cand


def _pool_kernel(x_ref, pooled_ref, *, inv_hw):
    # x_ref: (TM, HW) rows of the (N*C, HW) view.  Reduce over the lane axis
    # with f32 accumulation; only the (TM, 1) accumulator stays live.
    s = jnp.sum(x_ref[...].astype(jnp.float32), axis=-1, keepdims=True)
    pooled_ref[...] = (s * inv_hw).astype(pooled_ref.dtype)


def _bn_kernel(pooled_ref, gamma_ref, beta_ref, bn_ref):
    # pooled_ref: (N, C).  BatchNorm1d train-mode forward: batch mean, biased
    # batch variance, eps=1e-5, then affine (gamma, beta).
    p = pooled_ref[...].astype(jnp.float32)
    mean = jnp.mean(p, axis=0, keepdims=True)                       # (1, C)
    var = jnp.mean((p - mean) ** 2, axis=0, keepdims=True)          # (1, C)
    inv = jax.lax.rsqrt(var + _BN_EPS)
    y = (p - mean) * inv * gamma_ref[...].astype(jnp.float32)
    y = y + beta_ref[...].astype(jnp.float32)
    bn_ref[...] = y.astype(bn_ref.dtype)


def bnneck_forward(x, gamma, beta, loc="after"):
    """x: list/tuple of length 1 containing an NCHW array (like the torch module)."""
    assert isinstance(x, (list, tuple)) and len(x) == 1
    assert loc in ("after", "both")
    x_nchw = x[0]
    N, C, H, W = x_nchw.shape
    HW = H * W
    NC = N * C
    itemsize = jnp.dtype(x_nchw.dtype).itemsize

    # --- Pass 1: tiled global average pooling over the (N*C, HW) view -------
    x2d = x_nchw.reshape(NC, HW)           # free reshape for contiguous NCHW
    tm = _choose_row_tile(NC, HW, itemsize)
    grid = (pl.cdiv(NC, tm),)

    pooled_flat = pl.pallas_call(
        functools.partial(_pool_kernel, inv_hw=1.0 / HW),
        out_shape=jax.ShapeDtypeStruct((NC, 1), x_nchw.dtype),
        grid=grid,
        in_specs=[pl.BlockSpec((tm, HW), lambda i: (i, 0))],
        out_specs=pl.BlockSpec((tm, 1), lambda i: (i, 0)),
        compiler_params=pltpu.CompilerParams(
            dimension_semantics=("parallel",),   # lets v7x shard tiles over 2 TCs
            vmem_limit_bytes=32 * 1024 * 1024,   # explicit, with large headroom
        ),
        cost_estimate=pl.CostEstimate(
            flops=NC * HW,
            transcendentals=0,
            bytes_accessed=NC * HW * itemsize + NC * itemsize,
        ),
    )(x2d)

    pooled = pooled_flat.reshape(N, C)

    # --- Pass 2: tiny BatchNorm1d over the (N, C) pooled tensor -------------
    bn = pl.pallas_call(
        _bn_kernel,
        out_shape=jax.ShapeDtypeStruct((N, C), x_nchw.dtype),
        in_specs=[
            pl.BlockSpec(memory_space=pltpu.MemorySpace.VMEM),
            pl.BlockSpec(memory_space=pltpu.MemorySpace.VMEM),
            pl.BlockSpec(memory_space=pltpu.MemorySpace.VMEM),
        ],
        out_specs=pl.BlockSpec(memory_space=pltpu.MemorySpace.VMEM),
        cost_estimate=pl.CostEstimate(
            flops=8 * N * C,
            transcendentals=C,
            bytes_accessed=N * C * itemsize * 2 + 2 * C * 4,
        ),
    )(pooled, gamma.reshape(1, C), beta.reshape(1, C))

    if loc == "after":
        return [bn]
    return [pooled, bn]


def _reference(x_nchw, gamma, beta):
    pooled = jnp.mean(x_nchw, axis=(2, 3))
    mean = jnp.mean(pooled, axis=0, keepdims=True)
    var = jnp.mean((pooled - mean) ** 2, axis=0, keepdims=True)
    bn = (pooled - mean) / jnp.sqrt(var + _BN_EPS) * gamma[None, :] + beta[None, :]
    return pooled, bn


if __name__ == "__main__":
    key = jax.random.PRNGKey(0)
    N, C, H, W = 2, 4, 16, 16                  # small demo shapes (feat_dim = C)
    x = jax.random.normal(key, (N, C, H, W), dtype=jnp.float32)

    # Deterministic BN parameters (init_weights sets gamma=1, beta=0; use
    # slightly non-trivial values so the affine path is actually exercised).
    gamma = jnp.linspace(0.5, 1.5, C, dtype=jnp.float32)
    beta = jnp.linspace(-0.1, 0.1, C, dtype=jnp.float32)

    ref_pooled, ref_bn = _reference(x, gamma, beta)

    # loc='after'
    out = bnneck_forward([x], gamma, beta, loc="after")
    out = [jax.block_until_ready(o) for o in out]
    assert len(out) == 1
    assert jnp.allclose(out[0], ref_bn, atol=1e-5, rtol=1e-5), "bn mismatch (after)"

    # loc='both'
    both = bnneck_forward([x], gamma, beta, loc="both")
    both = [jax.block_until_ready(o) for o in both]
    assert len(both) == 2
    assert jnp.allclose(both[0], ref_pooled, atol=1e-5, rtol=1e-5), "pooled mismatch"
    assert jnp.allclose(both[1], ref_bn, atol=1e-5, rtol=1e-5), "bn mismatch (both)"

    print("KERNEL_OK")
</pallas_src>

<mosaic_0001>
module attributes {stable_mosaic.version = 11 : i64} {
  func.func @_pool_kernel(%arg0: i32, %arg1: memref<8x256xf32, #tpu.memory_space<vmem>>, %arg2: memref<8x1xf32, #tpu.memory_space<vmem>>) attributes {dimension_semantics = [#tpu.dimension_semantics<parallel>], iteration_bounds = array<i64: 1>, scalar_prefetch = 0 : i64, scratch_operands = 0 : i64, tpu.core_type = #tpu.core_type<tc>, window_params = [{transform_indices = @transform_0, window_bounds = array<i64: 8, 256>}, {transform_indices = @transform_1, window_bounds = array<i64: 8, 1>}]} {
    %c0 = arith.constant 0 : index
    %c0_0 = arith.constant 0 : index
    %0 = vector.load %arg1[%c0, %c0_0] : memref<8x256xf32, #tpu.memory_space<vmem>>, vector<8x256xf32>
    %cst = arith.constant dense<0.000000e+00> : vector<8xf32>
    %1 = vector.multi_reduction <add>, %0, %cst [1] : vector<8x256xf32> to vector<8xf32>
    %2 = vector.shape_cast %1 : vector<8xf32> to vector<8x1xf32>
    %cst_1 = arith.constant 3.906250e-03 : f32
    %3 = vector.broadcast %cst_1 : f32 to vector<8x1xf32>
    %4 = arith.mulf %2, %3 : vector<8x1xf32>
    %c0_2 = arith.constant 0 : index
    %c0_3 = arith.constant 0 : index
    %5 = vector.load %arg2[%c0_2, %c0_3] : memref<8x1xf32, #tpu.memory_space<vmem>>, vector<8x1xf32>
    tpu.vector_store %arg2[%c0_2, %c0_3], %4 {strides = array<i32>} : memref<8x1xf32, #tpu.memory_space<vmem>>, vector<8x1xf32>,
    return
  }
  func.func @transform_0(%arg0: i32) -> (i32, i32) {
    %c0_i32 = arith.constant 0 : i32
    %c0_i32_0 = arith.constant 0 : i32
    return %arg0, %c0_i32 : i32, i32
  }
  func.func @transform_1(%arg0: i32) -> (i32, i32) {
    %c0_i32 = arith.constant 0 : i32
    %c0_i32_0 = arith.constant 0 : i32
    return %arg0, %c0_i32 : i32, i32
  }
}

</mosaic_0001>

<llo_original>
// kernel: tpu_custom_call.1
$region0: #{tpu_custom_call.1}
  #allocation0 [shape = 'u32[]', space=smem, size = 0x4, offset = 0x4, fixed_abs, tag = 'smem constant byte address 0x4 - core index']
  #allocation1 [shape = 'u32[144,128]{1,0:T(1,128)}', space=vmem, size = 0x12000, scoped, tag = 'internal scratch']
  %s0 = inlined_call_operand.hbm [shape: f32[8,256], index: 0, kind: input, shape index: {}]
  %s1 = inlined_call_operand.vmem [shape: f32[8,1], index: 1, kind: output, shape index: {}]
  %s2 = sld [smem:[#allocation0]]
  $region18: #{tpu_custom_call.1} parent=0
    _
  %s4 = ssub.s32 1, %s2
  %s5 = scalar_select 0, %s4, %s2
  $region1: #{tpu_custom_call.1} parent=0
    #allocation2 [shape = 'u8[8192]{0}', space=vmem, size = 0x2000, scoped, tag = 'input window, operand 0, single buffered']
    #allocation3 [shape = 's32[1]{0}', space=sflag, size = 0x4, scoped, tag = 'scoped memory for tpu_custom_call.1']
    %6 = vsyncpa [#allocation3], 0
    // Predicated region
    $region2: #{tpu_custom_call.1} parent=1 // pred_check
      _
    $region3: #{tpu_custom_call.1} parent=1 // pred_check_branch
      %8 = sbr.rel (0) target = $region5
    $region4: #{tpu_custom_call.1} parent=1 // pred_region
      %s10 = ssub.s32 256, 256
      %11 = vsyncadd [#allocation3], %s10
      %s13 = sshll.u32 [#allocation2], 4
      %s14 = int_to_ptr.vmem [resolvable:$true] %s13
      %16 = dma.hbm_to_vmem [thread:$0]  %s0, 256, %s14, [#allocation3]
    $region5: #{tpu_custom_call.1} parent=1 // pred_fallthru
      _
    // Predicated region
    $region6: #{tpu_custom_call.1} parent=1 // pred_check
      _
    $region7: #{tpu_custom_call.1} parent=1 // pred_check_branch
      %18 = sbr.rel (0) target = $region9
    $region8: #{tpu_custom_call.1} parent=1 // pred_region
      %19 = dma.done [#allocation3], 256
    $region9: #{tpu_custom_call.1} parent=1 // pred_fallthru
      _
    %v20 = vld [vmem:[#allocation2] sm:$0xff]
    %v21 = vld [vmem:[#allocation2 + $0x8] sm:$0xff]
    %v22 = vadd.f32 %v20, %v21
    %23 = vadd.xlane.f32.xlu0 %v22
    %v24 = vpop.xlane.xlu0 %23
    %v25 = vmul.f32 %v24, 0.00390625
    %vm26 = vcmask 7168
    %27 = vst.msk [vmem:[%s1] sm:$0xff] %vm26, %v25
    // Predicated region
    $region10: #{tpu_custom_call.1} parent=1 // pred_check
      _
    $region11: #{tpu_custom_call.1} parent=1 // pred_check_branch
      %29 = sbr.rel (0) target = $region13
    $region12: #{tpu_custom_call.1} parent=1 // pred_region
      _
    $region13: #{tpu_custom_call.1} parent=1 // pred_fallthru
      _
    // Predicated region
    $region14: #{tpu_custom_call.1} parent=1 // pred_check
      _
    $region15: #{tpu_custom_call.1} parent=1 // pred_check_branch
      %31 = sbr.rel (0) target = $region17
    $region16: #{tpu_custom_call.1} parent=1 // pred_region
      _
    $region17: #{tpu_custom_call.1} parent=1 // pred_fallthru
      _
    %32 = vsyncpa [#allocation3], 1

</llo_original>
